<compile_context>
chip_gen: v5e
topology: v5e:2x2
jax: 0.10.0
libtpu: 0.0.40
codegen_flags: <defaults>
</compile_context>

<pallas_src>
import numpy as np
import jax
import jax.numpy as jnp
from jax import lax
from jax.experimental import pallas as pl
from jax.experimental.pallas import tpu as pltpu

LANE = 128


def _round_up(v, m):
    return (v + m - 1) // m * m


def make_fc_kernel(num_layers, precision):
    """num_layers x [Linear -> ReLU] in feature-major (batch-on-lanes) layout.

    Ref order: (xT, w_0..w_{n-1}, b_0..b_{n-1}, outT)
      xT   : (d_in, TB)     input batch tile, batch on the lane axis
      w_i  : (d_out, d_in)  VMEM-resident weight (natural PyTorch layout)
      b_i  : (d_out, 1)     VMEM-resident bias (broadcast over lanes)
      outT : (units, TB)    output batch tile
    """

    def kernel(*refs):
        x_ref = refs[0]
        w_refs = refs[1:1 + num_layers]
        b_refs = refs[1 + num_layers:1 + 2 * num_layers]
        out_ref = refs[1 + 2 * num_layers]

        h = x_ref[...]
        for w_ref, b_ref in zip(w_refs, b_refs):
            # (d_out, d_in) @ (d_in, TB) -> (d_out, TB).  Contraction runs over
            # the tiny unpadded feature dim; batch stays on lanes; f32 MXU acc.
            h = jnp.dot(
                w_ref[...], h,
                preferred_element_type=jnp.float32,
                precision=precision,
            )
            h = jnp.maximum(h + b_ref[...], 0.0)
        out_ref[...] = h

    return kernel


def nbeats_block_forward(x, params, *, tile_b=1024, min_parallel_tiles=2,
                         matmul_precision=lax.Precision.HIGHEST):
    """NBEATSBlock.forward: x (B, backcast_length) -> (B, units)."""
    weights = [jnp.asarray(w, jnp.float32) for w in params["weights"]]
    biases = [jnp.asarray(b, jnp.float32).reshape(-1, 1) for b in params["biases"]]
    num_layers = len(weights)
    B, L = x.shape
    assert weights[0].shape[1] == L, "first Linear must take backcast_length inputs"
    units = weights[-1].shape[0]

    # Feature-major layout: batch on the lane (last) axis, features on
    # sublanes, so the tiny feature dims need no 128-lane padding at all.
    xT = jnp.asarray(x, jnp.float32).T                     # (L, B)

    # --- batch (lane) tile selection -------------------------------------
    B_p = _round_up(B, LANE)                               # lane-align only
    want_tiles = min_parallel_tiles if B_p > LANE else 1   # megacore needs >=2 tiles
    n_tiles = max(pl.cdiv(B_p, tile_b), want_tiles)
    tb = _round_up(pl.cdiv(B_p, n_tiles), LANE)            # tile sized from B, not tile_b
    B_p = _round_up(B_p, tb)                               # < tb extra rows of padding

    if B_p != B:
        xT = jnp.pad(xT, ((0, 0), (0, B_p - B)))           # padded lanes are independent

    def resident(arr):
        # Weights / biases stay VMEM-resident across the whole batch grid.
        return pl.BlockSpec(arr.shape, lambda i: (0, 0))

    grid = (B_p // tb,)
    in_specs = [pl.BlockSpec((L, tb), lambda i: (0, i))]    # x streams by batch tile
    in_specs += [resident(w) for w in weights]
    in_specs += [resident(b) for b in biases]

    outT = pl.pallas_call(
        make_fc_kernel(num_layers, matmul_precision),
        out_shape=jax.ShapeDtypeStruct((units, B_p), jnp.float32),
        grid=grid,
        in_specs=in_specs,
        out_specs=pl.BlockSpec((units, tb), lambda i: (0, i)),
        compiler_params=pltpu.CompilerParams(
            dimension_semantics=("parallel",),
        ),
    )(xT, *weights, *biases)

    return outT[:, :B].T


def init_params(key, units, thetas_dim, backcast_length, num_block_layers=4):
    """Parameters of NBEATSBlock (PyTorch nn.Linear default init).

    Only the fc stack is used by forward(); w_theta is created for parity with
    the module constructor but is intentionally unused.
    """
    in_dims = [backcast_length] + [units] * (num_block_layers - 1)
    keys = jax.random.split(key, 2 * num_block_layers + 1)
    weights, biases = [], []
    for li, d_in in enumerate(in_dims):
        bound = 1.0 / np.sqrt(d_in)
        weights.append(jax.random.uniform(keys[2 * li], (units, d_in),
                                          jnp.float32, -bound, bound))
        biases.append(jax.random.uniform(keys[2 * li + 1], (units,),
                                         jnp.float32, -bound, bound))
    bound = 1.0 / np.sqrt(units)
    w_theta = jax.random.uniform(keys[-1], (thetas_dim, units), jnp.float32,
                                 -bound, bound)  # unused by forward()
    return {"weights": weights, "biases": biases, "w_theta": w_theta}


def nbeats_block_ref(x, params):
    """float64 host reference of NBEATSBlock.forward (fc stack)."""
    h = np.asarray(x, np.float64)
    for w, b in zip(params["weights"], params["biases"]):
        h = np.maximum(h @ np.asarray(w, np.float64).T + np.asarray(b, np.float64),
                       0.0)
    return h


if __name__ == "__main__":
    key = jax.random.PRNGKey(0)
    kp, kx1, kx2 = jax.random.split(key, 3)

    units = 32
    thetas_dim = 4
    backcast_length = 16
    num_block_layers = 4

    params = init_params(kp, units, thetas_dim, backcast_length, num_block_layers)

    # Small batch: single 128-lane tile.
    x_small = jax.random.normal(kx1, (8, backcast_length), dtype=jnp.float32)
    y_small = nbeats_block_forward(x_small, params)
    jax.block_until_ready(y_small)
    assert y_small.shape == (8, units)
    np.testing.assert_allclose(np.asarray(y_small), nbeats_block_ref(x_small, params),
                               rtol=1e-4, atol=1e-4)

    # Larger batch: exercises >=2 parallel grid tiles (megacore path) and the
    # minimal (< one tile) batch padding.
    x_big = jax.random.normal(kx2, (300, backcast_length), dtype=jnp.float32)
    y_big = nbeats_block_forward(x_big, params)
    jax.block_until_ready(y_big)
    assert y_big.shape == (300, units)
    np.testing.assert_allclose(np.asarray(y_big), nbeats_block_ref(x_big, params),
                               rtol=1e-4, atol=1e-4)

    print("KERNEL_OK")
</pallas_src>

<mosaic_0001>
module attributes {stable_mosaic.version = 11 : i64} {
  func.func @kernel(%arg0: i32, %arg1: memref<16x128xf32, #tpu.memory_space<vmem>>, %arg2: memref<32x16xf32, #tpu.memory_space<vmem>>, %arg3: memref<32x32xf32, #tpu.memory_space<vmem>>, %arg4: memref<32x32xf32, #tpu.memory_space<vmem>>, %arg5: memref<32x32xf32, #tpu.memory_space<vmem>>, %arg6: memref<32x1xf32, #tpu.memory_space<vmem>>, %arg7: memref<32x1xf32, #tpu.memory_space<vmem>>, %arg8: memref<32x1xf32, #tpu.memory_space<vmem>>, %arg9: memref<32x1xf32, #tpu.memory_space<vmem>>, %arg10: memref<32x128xf32, #tpu.memory_space<vmem>>) attributes {dimension_semantics = [#tpu.dimension_semantics<parallel>], iteration_bounds = array<i64: 1>, scalar_prefetch = 0 : i64, scratch_operands = 0 : i64, tpu.core_type = #tpu.core_type<tc>, window_params = [{transform_indices = @transform_0, window_bounds = array<i64: 16, 128>}, {pipeline_mode = #tpu.pipeline_mode<synchronous>, transform_indices = @transform_1, window_bounds = array<i64: 32, 16>}, {pipeline_mode = #tpu.pipeline_mode<synchronous>, transform_indices = @transform_2, window_bounds = array<i64: 32, 32>}, {pipeline_mode = #tpu.pipeline_mode<synchronous>, transform_indices = @transform_3, window_bounds = array<i64: 32, 32>}, {pipeline_mode = #tpu.pipeline_mode<synchronous>, transform_indices = @transform_4, window_bounds = array<i64: 32, 32>}, {pipeline_mode = #tpu.pipeline_mode<synchronous>, transform_indices = @transform_5, window_bounds = array<i64: 32, 1>}, {pipeline_mode = #tpu.pipeline_mode<synchronous>, transform_indices = @transform_6, window_bounds = array<i64: 32, 1>}, {pipeline_mode = #tpu.pipeline_mode<synchronous>, transform_indices = @transform_7, window_bounds = array<i64: 32, 1>}, {pipeline_mode = #tpu.pipeline_mode<synchronous>, transform_indices = @transform_8, window_bounds = array<i64: 32, 1>}, {transform_indices = @transform_9, window_bounds = array<i64: 32, 128>}]} {
    %c0 = arith.constant 0 : index
    %c0_0 = arith.constant 0 : index
    %0 = vector.load %arg1[%c0, %c0_0] : memref<16x128xf32, #tpu.memory_space<vmem>>, vector<16x128xf32>
    %c0_1 = arith.constant 0 : index
    %c0_2 = arith.constant 0 : index
    %1 = vector.load %arg2[%c0_1, %c0_2] : memref<32x16xf32, #tpu.memory_space<vmem>>, vector<32x16xf32>
    %cst = arith.constant dense<0.000000e+00> : vector<32x128xf32>
    %2 = tpu.matmul %1, %0, %cst {dimension_numbers = #tpu.dot_dimension_numbers<[1], [0], [0], [1], [0, 0, 1, 1], [], []>, precision = #tpu.contract_precision<fp32>} : vector<32x16xf32>, vector<16x128xf32>, vector<32x128xf32> -> vector<32x128xf32>
    %c0_3 = arith.constant 0 : index
    %c0_4 = arith.constant 0 : index
    %3 = vector.load %arg6[%c0_3, %c0_4] : memref<32x1xf32, #tpu.memory_space<vmem>>, vector<32x1xf32>
    %4 = vector.broadcast %3 : vector<32x1xf32> to vector<32x128xf32>
    %5 = arith.addf %2, %4 : vector<32x128xf32>
    %cst_5 = arith.constant 0.000000e+00 : f32
    %6 = vector.broadcast %cst_5 : f32 to vector<32x128xf32>
    %7 = arith.maximumf %5, %6 : vector<32x128xf32>
    %c0_6 = arith.constant 0 : index
    %c0_7 = arith.constant 0 : index
    %8 = vector.load %arg3[%c0_6, %c0_7] : memref<32x32xf32, #tpu.memory_space<vmem>>, vector<32x32xf32>
    %cst_8 = arith.constant dense<0.000000e+00> : vector<32x128xf32>
    %9 = tpu.matmul %8, %7, %cst_8 {dimension_numbers = #tpu.dot_dimension_numbers<[1], [0], [0], [1], [0, 0, 1, 1], [], []>, precision = #tpu.contract_precision<fp32>} : vector<32x32xf32>, vector<32x128xf32>, vector<32x128xf32> -> vector<32x128xf32>
    %c0_9 = arith.constant 0 : index
    %c0_10 = arith.constant 0 : index
    %10 = vector.load %arg7[%c0_9, %c0_10] : memref<32x1xf32, #tpu.memory_space<vmem>>, vector<32x1xf32>
    %11 = vector.broadcast %10 : vector<32x1xf32> to vector<32x128xf32>
    %12 = arith.addf %9, %11 : vector<32x128xf32>
    %cst_11 = arith.constant 0.000000e+00 : f32
    %13 = vector.broadcast %cst_11 : f32 to vector<32x128xf32>
    %14 = arith.maximumf %12, %13 : vector<32x128xf32>
    %c0_12 = arith.constant 0 : index
    %c0_13 = arith.constant 0 : index
    %15 = vector.load %arg4[%c0_12, %c0_13] : memref<32x32xf32, #tpu.memory_space<vmem>>, vector<32x32xf32>
    %cst_14 = arith.constant dense<0.000000e+00> : vector<32x128xf32>
    %16 = tpu.matmul %15, %14, %cst_14 {dimension_numbers = #tpu.dot_dimension_numbers<[1], [0], [0], [1], [0, 0, 1, 1], [], []>, precision = #tpu.contract_precision<fp32>} : vector<32x32xf32>, vector<32x128xf32>, vector<32x128xf32> -> vector<32x128xf32>
    %c0_15 = arith.constant 0 : index
    %c0_16 = arith.constant 0 : index
    %17 = vector.load %arg8[%c0_15, %c0_16] : memref<32x1xf32, #tpu.memory_space<vmem>>, vector<32x1xf32>
    %18 = vector.broadcast %17 : vector<32x1xf32> to vector<32x128xf32>
    %19 = arith.addf %16, %18 : vector<32x128xf32>
    %cst_17 = arith.constant 0.000000e+00 : f32
    %20 = vector.broadcast %cst_17 : f32 to vector<32x128xf32>
    %21 = arith.maximumf %19, %20 : vector<32x128xf32>
    %c0_18 = arith.constant 0 : index
    %c0_19 = arith.constant 0 : index
    %22 = vector.load %arg5[%c0_18, %c0_19] : memref<32x32xf32, #tpu.memory_space<vmem>>, vector<32x32xf32>
    %cst_20 = arith.constant dense<0.000000e+00> : vector<32x128xf32>
    %23 = tpu.matmul %22, %21, %cst_20 {dimension_numbers = #tpu.dot_dimension_numbers<[1], [0], [0], [1], [0, 0, 1, 1], [], []>, precision = #tpu.contract_precision<fp32>} : vector<32x32xf32>, vector<32x128xf32>, vector<32x128xf32> -> vector<32x128xf32>
    %c0_21 = arith.constant 0 : index
    %c0_22 = arith.constant 0 : index
    %24 = vector.load %arg9[%c0_21, %c0_22] : memref<32x1xf32, #tpu.memory_space<vmem>>, vector<32x1xf32>
    %25 = vector.broadcast %24 : vector<32x1xf32> to vector<32x128xf32>
    %26 = arith.addf %23, %25 : vector<32x128xf32>
    %cst_23 = arith.constant 0.000000e+00 : f32
    %27 = vector.broadcast %cst_23 : f32 to vector<32x128xf32>
    %28 = arith.maximumf %26, %27 : vector<32x128xf32>
    %c0_24 = arith.constant 0 : index
    %c0_25 = arith.constant 0 : index
    %29 = vector.load %arg10[%c0_24, %c0_25] : memref<32x128xf32, #tpu.memory_space<vmem>>, vector<32x128xf32>
    tpu.vector_store %arg10[%c0_24, %c0_25], %28 {strides = array<i32>} : memref<32x128xf32, #tpu.memory_space<vmem>>, vector<32x128xf32>,
    return
  }
  func.func @transform_0(%arg0: i32) -> (i32, i32) {
    %c0_i32 = arith.constant 0 : i32
    %c0_i32_0 = arith.constant 0 : i32
    return %c0_i32, %arg0 : i32, i32
  }
  func.func @transform_1(%arg0: i32) -> (i32, i32) {
    %c0_i32 = arith.constant 0 : i32
    %c0_i32_0 = arith.constant 0 : i32
    %c0_i32_1 = arith.constant 0 : i32
    return %c0_i32, %c0_i32_0 : i32, i32
  }
  func.func @transform_2(%arg0: i32) -> (i32, i32) {
    %c0_i32 = arith.constant 0 : i32
    %c0_i32_0 = arith.constant 0 : i32
    %c0_i32_1 = arith.constant 0 : i32
    return %c0_i32, %c0_i32_0 : i32, i32
  }
  func.func @transform_3(%arg0: i32) -> (i32, i32) {
    %c0_i32 = arith.constant 0 : i32
    %c0_i32_0 = arith.constant 0 : i32
    %c0_i32_1 = arith.constant 0 : i32
    return %c0_i32, %c0_i32_0 : i32, i32
  }
  func.func @transform_4(%arg0: i32) -> (i32, i32) {
    %c0_i32 = arith.constant 0 : i32
    %c0_i32_0 = arith.constant 0 : i32
    %c0_i32_1 = arith.constant 0 : i32
    return %c0_i32, %c0_i32_0 : i32, i32
  }
  func.func @transform_5(%arg0: i32) -> (i32, i32) {
    %c0_i32 = arith.constant 0 : i32
    %c0_i32_0 = arith.constant 0 : i32
    %c0_i32_1 = arith.constant 0 : i32
    return %c0_i32, %c0_i32_0 : i32, i32
  }
  func.func @transform_6(%arg0: i32) -> (i32, i32) {
    %c0_i32 = arith.constant 0 : i32
    %c0_i32_0 = arith.constant 0 : i32
    %c0_i32_1 = arith.constant 0 : i32
    return %c0_i32, %c0_i32_0 : i32, i32
  }
  func.func @transform_7(%arg0: i32) -> (i32, i32) {
    %c0_i32 = arith.constant 0 : i32
    %c0_i32_0 = arith.constant 0 : i32
    %c0_i32_1 = arith.constant 0 : i32
    return %c0_i32, %c0_i32_0 : i32, i32
  }
  func.func @transform_8(%arg0: i32) -> (i32, i32) {
    %c0_i32 = arith.constant 0 : i32
    %c0_i32_0 = arith.constant 0 : i32
    %c0_i32_1 = arith.constant 0 : i32
    return %c0_i32, %c0_i32_0 : i32, i32
  }
  func.func @transform_9(%arg0: i32) -> (i32, i32) {
    %c0_i32 = arith.constant 0 : i32
    %c0_i32_0 = arith.constant 0 : i32
    return %c0_i32, %arg0 : i32, i32
  }
}

</mosaic_0001>

<llo_original>
// kernel: tpu_custom_call.1
$region0: #{tpu_custom_call.1}
  #allocation0 [shape = 'u32[]', space=smem, size = 0x4, offset = 0x4, fixed_abs, tag = 'smem constant byte address 0x4 - core index']
  #allocation1 [shape = 'u32[72,128]{1,0:T(1,128)}', space=vmem, size = 0x9000, scoped, tag = 'internal scratch']
  %s0 = inlined_call_operand.vmem [shape: f32[16,128], index: 0, kind: input, shape index: {}]
  %s1 = inlined_call_operand.vmem [shape: f32[32,16], index: 1, kind: input, shape index: {}]
  %s2 = inlined_call_operand.vmem [shape: f32[32,32], index: 2, kind: input, shape index: {}]
  %s3 = inlined_call_operand.vmem [shape: f32[32,32], index: 3, kind: input, shape index: {}]
  %s4 = inlined_call_operand.vmem [shape: f32[32,32], index: 4, kind: input, shape index: {}]
  %s5 = inlined_call_operand.vmem [shape: f32[32,1], index: 5, kind: input, shape index: {}]
  %s6 = inlined_call_operand.vmem [shape: f32[32,1], index: 6, kind: input, shape index: {}]
  %s7 = inlined_call_operand.vmem [shape: f32[32,1], index: 7, kind: input, shape index: {}]
  %s8 = inlined_call_operand.vmem [shape: f32[32,1], index: 8, kind: input, shape index: {}]
  %s9 = inlined_call_operand.hbm [shape: f32[32,128], index: 9, kind: output, shape index: {}]
  %s10 = sld [smem:[#allocation0]]
  $region46: #{tpu_custom_call.1} parent=0
    _
  %s12 = ssub.s32 1, %s10
  %s13 = scalar_select 0, %s12, %s10
  $region1: #{tpu_custom_call.1} parent=0
    #allocation2 [shape = 'u8[16384]{0}', space=vmem, size = 0x4000, scoped, tag = 'output window, operand 0, single buffered']
    #allocation3 [shape = 's32[1]{0}', space=sflag, size = 0x4, scoped, tag = 'scoped memory for tpu_custom_call.1']
    %14 = vsyncpa [#allocation3], 0
    // Predicated region
    $region2: #{tpu_custom_call.1} parent=1 // pred_check
      _
    $region3: #{tpu_custom_call.1} parent=1 // pred_check_branch
      %16 = sbr.rel (0) target = $region5
    $region4: #{tpu_custom_call.1} parent=1 // pred_region
      _
    $region5: #{tpu_custom_call.1} parent=1 // pred_fallthru
      _
    // Predicated region
    $region6: #{tpu_custom_call.1} parent=1 // pred_check
      _
    $region7: #{tpu_custom_call.1} parent=1 // pred_check_branch
      %18 = sbr.rel (0) target = $region9
    $region8: #{tpu_custom_call.1} parent=1 // pred_region
      _
    $region9: #{tpu_custom_call.1} parent=1 // pred_fallthru
      _
    // Predicated region
    $region10: #{tpu_custom_call.1} parent=1 // pred_check
      _
    $region11: #{tpu_custom_call.1} parent=1 // pred_check_branch
      %20 = sbr.rel (0) target = $region13
    $region12: #{tpu_custom_call.1} parent=1 // pred_region
      _
    $region13: #{tpu_custom_call.1} parent=1 // pred_fallthru
      _
    // Predicated region
    $region14: #{tpu_custom_call.1} parent=1 // pred_check
      _
    $region15: #{tpu_custom_call.1} parent=1 // pred_check_branch
      %22 = sbr.rel (0) target = $region17
    $region16: #{tpu_custom_call.1} parent=1 // pred_region
      _
    $region17: #{tpu_custom_call.1} parent=1 // pred_fallthru
      _
    // Predicated region
    $region18: #{tpu_custom_call.1} parent=1 // pred_check
      _
    $region19: #{tpu_custom_call.1} parent=1 // pred_check_branch
      %24 = sbr.rel (0) target = $region21
    $region20: #{tpu_custom_call.1} parent=1 // pred_region
      _
    $region21: #{tpu_custom_call.1} parent=1 // pred_fallthru
      _
    // Predicated region
    $region22: #{tpu_custom_call.1} parent=1 // pred_check
      _
    $region23: #{tpu_custom_call.1} parent=1 // pred_check_branch
      %26 = sbr.rel (0) target = $region25
    $region24: #{tpu_custom_call.1} parent=1 // pred_region
      _
    $region25: #{tpu_custom_call.1} parent=1 // pred_fallthru
      _
    // Predicated region
    $region26: #{tpu_custom_call.1} parent=1 // pred_check
      _
    $region27: #{tpu_custom_call.1} parent=1 // pred_check_branch
      %28 = sbr.rel (0) target = $region29
    $region28: #{tpu_custom_call.1} parent=1 // pred_region
      _
    $region29: #{tpu_custom_call.1} parent=1 // pred_fallthru
      _
    // Predicated region
    $region30: #{tpu_custom_call.1} parent=1 // pred_check
      _
    $region31: #{tpu_custom_call.1} parent=1 // pred_check_branch
      %30 = sbr.rel (0) target = $region33
    $region32: #{tpu_custom_call.1} parent=1 // pred_region
      _
    $region33: #{tpu_custom_call.1} parent=1 // pred_fallthru
      _
    // Predicated region
    $region34: #{tpu_custom_call.1} parent=1 // pred_check
      _
    $region35: #{tpu_custom_call.1} parent=1 // pred_check_branch
      %32 = sbr.rel (0) target = $region37
    $region36: #{tpu_custom_call.1} parent=1 // pred_region
      _
    $region37: #{tpu_custom_call.1} parent=1 // pred_fallthru
      _
    %v33 = vld [vmem:[%s0] sm:$0xff]
    %v34 = vld [vmem:[%s0 + $0x8] sm:$0xff]
    %v35 = vld [vmem:[%s1] sm:$0xff]
    %v36 = vld [vmem:[%s1 + $0x8] sm:$0xff]
    %v37 = vld [vmem:[%s1 + $0x10] sm:$0xff]
    %v38 = vld [vmem:[%s1 + $0x18] sm:$0xff]
    %v39 = vld [vmem:[%s5] sm:$0xff]
    %v40 = vld [vmem:[%s5 + $0x8] sm:$0xff]
    %v41 = vld [vmem:[%s5 + $0x10] sm:$0xff]
    %v42 = vld [vmem:[%s5 + $0x18] sm:$0xff]
    %44 = vset.pattern.permute.xlu0 0
    %45 = vperm.xlu0 %44, %v39
    %v46 = vpop.permute.xlu0 %45
    %49 = vset.pattern.permute.xlu0 0
    %50 = vperm.xlu0 %49, %v40
    %v51 = vpop.permute.xlu0 %50
    %54 = vset.pattern.permute.xlu0 0
    %55 = vperm.xlu0 %54, %v41
    %v56 = vpop.permute.xlu0 %55
    %59 = vset.pattern.permute.xlu0 0
    %60 = vperm.xlu0 %59, %v42
    %v61 = vpop.permute.xlu0 %60
    %vm63 = vcmask 130048
    %v65 = vsel %vm63, %v35, 0
    %v68 = vsel %vm63, %v36, 0
    %v71 = vsel %vm63, %v37, 0
    %v74 = vsel %vm63, %v38, 0
    %76 = vmatpush.msra.mxu0 0.0
    %77 = vmatpush.msra.mxu0 0.0
    %78 = vmatpush.msra.mxu0 0.0
    %79 = vmatpush.msra.mxu0 0.0
    %80 = vmatpush.msra.mxu0 0.0
    %81 = vmatpush.msra.mxu0 0.0
    %82 = vmatpush.msra.mxu0 0.0
    %83 = vmatpush.msra.mxu0 0.0
    %84 = vmatpush.msra.mxu0 0.0
    %85 = vmatpush.msra.mxu0 0.0
    %86 = vmatpush.msra.mxu0 0.0
    %87 = vmatpush.msra.mxu0 0.0
    %88 = vmatpush.msra.mxu0 0.0
    %89 = vmatpush.msra.mxu0 0.0
    %v90 = vand.u32 %v34, 4294901760
    %91 = vmatpush.msra.mxu0 %v90
    %v92 = vand.u32 %v33, 4294901760
    %93 = vmatpush.msra.mxu0 %v92
    %v94 = vand.u32 %v65, 4294901760
    %v95 = vsub.f32 %v65, %v94
    %v96 = vand.u32 %v95, 4294901760
    %v97 = vsub.f32 %v95, %v96
    %v98 = vand.u32 %v97, 4294901760
    %99 = vmatmul.f32.gmra.mxu0 %v98
    %v100 = vpop.f32.mrf.mxu0
    %v101 = vadd.f32 %v46, %v100
    %v102 = vand.u32 %v68, 4294901760
    %v103 = vsub.f32 %v68, %v102
    %v104 = vand.u32 %v103, 4294901760
    %v105 = vsub.f32 %v103, %v104
    %v106 = vand.u32 %v105, 4294901760
    %107 = vmatmul.f32.gmra.mxu0 %v106
    %v108 = vpop.f32.mrf.mxu0
    %v109 = vadd.f32 %v51, %v108
    %v110 = vand.u32 %v71, 4294901760
    %v111 = vsub.f32 %v71, %v110
    %v112 = vand.u32 %v111, 4294901760
    %v113 = vsub.f32 %v111, %v112
    %v114 = vand.u32 %v113, 4294901760
    %115 = vmatmul.f32.gmra.mxu0 %v114
    %v116 = vpop.f32.mrf.mxu0
    %v117 = vadd.f32 %v56, %v116
    %v118 = vand.u32 %v74, 4294901760
    %v119 = vsub.f32 %v74, %v118
    %v120 = vand.u32 %v119, 4294901760
    %v121 = vsub.f32 %v119, %v120
    %v122 = vand.u32 %v121, 4294901760
    %123 = vmatmul.f32.gmra.mxu0 %v122
    %v124 = vpop.f32.mrf.mxu0
    %v125 = vadd.f32 %v61, %v124
    %126 = vdwg.mxu0
    %127 = vmatpush.msra.mxu0 0.0
    %128 = vmatpush.msra.mxu0 0.0
    %129 = vmatpush.msra.mxu0 0.0
    %130 = vmatpush.msra.mxu0 0.0
    %131 = vmatpush.msra.mxu0 0.0
    %132 = vmatpush.msra.mxu0 0.0
    %133 = vmatpush.msra.mxu0 0.0
    %134 = vmatpush.msra.mxu0 0.0
    %135 = vmatpush.msra.mxu0 0.0
    %136 = vmatpush.msra.mxu0 0.0
    %137 = vmatpush.msra.mxu0 0.0
    %138 = vmatpush.msra.mxu0 0.0
    %139 = vmatpush.msra.mxu0 0.0
    %140 = vmatpush.msra.mxu0 0.0
    %v141 = vand.u32 %v34, 4294901760
    %v142 = vsub.f32 %v34, %v141
    %v143 = vand.u32 %v142, 4294901760
    %v144 = vsub.f32 %v142, %v143
    %v145 = vand.u32 %v144, 4294901760
    %146 = vmatpush.msra.mxu0 %v145
    %v147 = vand.u32 %v33, 4294901760
    %v148 = vsub.f32 %v33, %v147
    %v149 = vand.u32 %v148, 4294901760
    %v150 = vsub.f32 %v148, %v149
    %v151 = vand.u32 %v150, 4294901760
    %152 = vmatpush.msra.mxu0 %v151
    %v153 = vand.u32 %v65, 4294901760
    %154 = vmatmul.f32.gmra.mxu0 %v153
    %v155 = vpop.f32.mrf.mxu0
    %v156 = vadd.f32 %v101, %v155
    %v157 = vand.u32 %v68, 4294901760
    %158 = vmatmul.f32.gmra.mxu0 %v157
    %v159 = vpop.f32.mrf.mxu0
    %v160 = vadd.f32 %v109, %v159
    %v161 = vand.u32 %v71, 4294901760
    %162 = vmatmul.f32.gmra.mxu0 %v161
    %v163 = vpop.f32.mrf.mxu0
    %v164 = vadd.f32 %v117, %v163
    %v165 = vand.u32 %v74, 4294901760
    %166 = vmatmul.f32.gmra.mxu0 %v165
    %v167 = vpop.f32.mrf.mxu0
    %v168 = vadd.f32 %v125, %v167
    %169 = vdwg.mxu0
    %170 = vmatpush.msra.mxu0 0.0
    %171 = vmatpush.msra.mxu0 0.0
    %172 = vmatpush.msra.mxu0 0.0
    %173 = vmatpush.msra.mxu0 0.0
    %174 = vmatpush.msra.mxu0 0.0
    %175 = vmatpush.msra.mxu0 0.0
    %176 = vmatpush.msra.mxu0 0.0
    %177 = vmatpush.msra.mxu0 0.0
    %178 = vmatpush.msra.mxu0 0.0
    %179 = vmatpush.msra.mxu0 0.0
    %180 = vmatpush.msra.mxu0 0.0
    %181 = vmatpush.msra.mxu0 0.0
    %182 = vmatpush.msra.mxu0 0.0
    %183 = vmatpush.msra.mxu0 0.0
    %v184 = vand.u32 %v34, 4294901760
    %v185 = vsub.f32 %v34, %v184
    %186 = vmatpush.msra.mxu0 %v185
    %v187 = vand.u32 %v33, 4294901760
    %v188 = vsub.f32 %v33, %v187
    %189 = vmatpush.msra.mxu0 %v188
    %v190 = vand.u32 %v65, 4294901760
    %v191 = vsub.f32 %v65, %v190
    %192 = vmatmul.f32.gmra.mxu0 %v191
    %v193 = vpop.f32.mrf.mxu0
    %v194 = vadd.f32 %v156, %v193
    %v195 = vand.u32 %v68, 4294901760
    %v196 = vsub.f32 %v68, %v195
    %197 = vmatmul.f32.gmra.mxu0 %v196
    %v198 = vpop.f32.mrf.mxu0
    %v199 = vadd.f32 %v160, %v198
    %v200 = vand.u32 %v71, 4294901760
    %v201 = vsub.f32 %v71, %v200
    %202 = vmatmul.f32.gmra.mxu0 %v201
    %v203 = vpop.f32.mrf.mxu0
    %v204 = vadd.f32 %v164, %v203
    %v205 = vand.u32 %v74, 4294901760
    %v206 = vsub.f32 %v74, %v205
    %207 = vmatmul.f32.gmra.mxu0 %v206
    %v208 = vpop.f32.mrf.mxu0
    %v209 = vadd.f32 %v168, %v208
    %210 = vdwg.mxu0
    %211 = vmatpush.msra.mxu0 0.0
    %212 = vmatpush.msra.mxu0 0.0
    %213 = vmatpush.msra.mxu0 0.0
    %214 = vmatpush.msra.mxu0 0.0
    %215 = vmatpush.msra.mxu0 0.0
    %216 = vmatpush.msra.mxu0 0.0
    %217 = vmatpush.msra.mxu0 0.0
    %218 = vmatpush.msra.mxu0 0.0
    %219 = vmatpush.msra.mxu0 0.0
    %220 = vmatpush.msra.mxu0 0.0
    %221 = vmatpush.msra.mxu0 0.0
    %222 = vmatpush.msra.mxu0 0.0
    %223 = vmatpush.msra.mxu0 0.0
    %224 = vmatpush.msra.mxu0 0.0
    %v225 = vand.u32 %v34, 4294901760
    %226 = vmatpush.msra.mxu0 %v225
    %v227 = vand.u32 %v33, 4294901760
    %228 = vmatpush.msra.mxu0 %v227
    %v229 = vand.u32 %v65, 4294901760
    %v230 = vsub.f32 %v65, %v229
    %v231 = vand.u32 %v230, 4294901760
    %232 = vmatmul.f32.gmra.mxu0 %v231
    %v233 = vpop.f32.mrf.mxu0
    %v234 = vadd.f32 %v194, %v233
    %v235 = vand.u32 %v68, 4294901760
    %v236 = vsub.f32 %v68, %v235
    %v237 = vand.u32 %v236, 4294901760
    %238 = vmatmul.f32.gmra.mxu0 %v237
    %v239 = vpop.f32.mrf.mxu0
    %v240 = vadd.f32 %v199, %v239
    %v241 = vand.u32 %v71, 4294901760
    %v242 = vsub.f32 %v71, %v241
    %v243 = vand.u32 %v242, 4294901760
    %244 = vmatmul.f32.gmra.mxu0 %v243
    %v245 = vpop.f32.mrf.mxu0
    %v246 = vadd.f32 %v204, %v245
    %v247 = vand.u32 %v74, 4294901760
    %v248 = vsub.f32 %v74, %v247
    %v249 = vand.u32 %v248, 4294901760
    %250 = vmatmul.f32.gmra.mxu0 %v249
    %v251 = vpop.f32.mrf.mxu0
    %v252 = vadd.f32 %v209, %v251
    %253 = vdwg.mxu0
    %254 = vmatpush.msra.mxu0 0.0
    %255 = vmatpush.msra.mxu0 0.0
    %256 = vmatpush.msra.mxu0 0.0
    %257 = vmatpush.msra.mxu0 0.0
    %258 = vmatpush.msra.mxu0 0.0
    %259 = vmatpush.msra.mxu0 0.0
    %260 = vmatpush.msra.mxu0 0.0
    %261 = vmatpush.msra.mxu0 0.0
    %262 = vmatpush.msra.mxu0 0.0
    %263 = vmatpush.msra.mxu0 0.0
    %264 = vmatpush.msra.mxu0 0.0
    %265 = vmatpush.msra.mxu0 0.0
    %266 = vmatpush.msra.mxu0 0.0
    %267 = vmatpush.msra.mxu0 0.0
    %v268 = vand.u32 %v34, 4294901760
    %v269 = vsub.f32 %v34, %v268
    %v270 = vand.u32 %v269, 4294901760
    %271 = vmatpush.msra.mxu0 %v270
    %v272 = vand.u32 %v33, 4294901760
    %v273 = vsub.f32 %v33, %v272
    %v274 = vand.u32 %v273, 4294901760
    %275 = vmatpush.msra.mxu0 %v274
    %v276 = vand.u32 %v65, 4294901760
    %277 = vmatmul.f32.gmra.mxu0 %v276
    %v278 = vpop.f32.mrf.mxu0
    %v279 = vadd.f32 %v234, %v278
    %v280 = vand.u32 %v68, 4294901760
    %281 = vmatmul.f32.gmra.mxu0 %v280
    %v282 = vpop.f32.mrf.mxu0
    %v283 = vadd.f32 %v240, %v282
    %v284 = vand.u32 %v71, 4294901760
    %285 = vmatmul.f32.gmra.mxu0 %v284
    %v286 = vpop.f32.mrf.mxu0
    %v287 = vadd.f32 %v246, %v286
    %v288 = vand.u32 %v74, 4294901760
    %289 = vmatmul.f32.gmra.mxu0 %v288
    %v290 = vpop.f32.mrf.mxu0
    %v291 = vadd.f32 %v252, %v290
    %292 = vdwg.mxu0
    %293 = vmatpush.msra.mxu0 0.0
    %294 = vmatpush.msra.mxu0 0.0
    %295 = vmatpush.msra.mxu0 0.0
    %296 = vmatpush.msra.mxu0 0.0
    %297 = vmatpush.msra.mxu0 0.0
    %298 = vmatpush.msra.mxu0 0.0
    %299 = vmatpush.msra.mxu0 0.0
    %300 = vmatpush.msra.mxu0 0.0
    %301 = vmatpush.msra.mxu0 0.0
    %302 = vmatpush.msra.mxu0 0.0
    %303 = vmatpush.msra.mxu0 0.0
    %304 = vmatpush.msra.mxu0 0.0
    %305 = vmatpush.msra.mxu0 0.0
    %306 = vmatpush.msra.mxu0 0.0
    %v307 = vand.u32 %v34, 4294901760
    %308 = vmatpush.msra.mxu0 %v307
    %v309 = vand.u32 %v33, 4294901760
    %310 = vmatpush.msra.mxu0 %v309
    %v311 = vand.u32 %v65, 4294901760
    %312 = vmatmul.f32.gmra.mxu0 %v311
    %v313 = vpop.f32.mrf.mxu0
    %v314 = vadd.f32 %v279, %v313
    %v315 = vand.u32 %v68, 4294901760
    %316 = vmatmul.f32.gmra.mxu0 %v315
    %v317 = vpop.f32.mrf.mxu0
    %v318 = vadd.f32 %v283, %v317
    %v319 = vand.u32 %v71, 4294901760
    %320 = vmatmul.f32.gmra.mxu0 %v319
    %v321 = vpop.f32.mrf.mxu0
    %v322 = vadd.f32 %v287, %v321
    %v323 = vand.u32 %v74, 4294901760
    %324 = vmatmul.f32.gmra.mxu0 %v323
    %v325 = vpop.f32.mrf.mxu0
    %v326 = vadd.f32 %v291, %v325
    %327 = vdwg.mxu0
    %v328 = vmax.f32 %v314, 0.0
    %v329 = vmax.f32 %v318, 0.0
    %v330 = vmax.f32 %v322, 0.0
    %v331 = vmax.f32 %v326, 0.0
    %v332 = vld [vmem:[%s2] sm:$0xff]
    %v333 = vld [vmem:[%s2 + $0x8] sm:$0xff]
    %v334 = vld [vmem:[%s2 + $0x10] sm:$0xff]
    %v335 = vld [vmem:[%s2 + $0x18] sm:$0xff]
    %v336 = vld [vmem:[%s6] sm:$0xff]
    %v337 = vld [vmem:[%s6 + $0x8] sm:$0xff]
    %v338 = vld [vmem:[%s6 + $0x10] sm:$0xff]
    %v339 = vld [vmem:[%s6 + $0x18] sm:$0xff]
    %341 = vset.pattern.permute.xlu0 0
    %342 = vperm.xlu0 %341, %v336
    %v343 = vpop.permute.xlu0 %342
    %346 = vset.pattern.permute.xlu0 0
    %347 = vperm.xlu0 %346, %v337
    %v348 = vpop.permute.xlu0 %347
    %351 = vset.pattern.permute.xlu0 0
    %352 = vperm.xlu0 %351, %v338
    %v353 = vpop.permute.xlu0 %352
    %356 = vset.pattern.permute.xlu0 0
    %357 = vperm.xlu0 %356, %v339
    %v358 = vpop.permute.xlu0 %357
    %vm360 = vcmask 261120
    %v362 = vsel %vm360, %v332, 0
    %v365 = vsel %vm360, %v333, 0
    %v368 = vsel %vm360, %v334, 0
    %v371 = vsel %vm360, %v335, 0
    %373 = vmatpush.msra.mxu0 0.0
    %374 = vmatpush.msra.mxu0 0.0
    %375 = vmatpush.msra.mxu0 0.0
    %376 = vmatpush.msra.mxu0 0.0
    %377 = vmatpush.msra.mxu0 0.0
    %378 = vmatpush.msra.mxu0 0.0
    %379 = vmatpush.msra.mxu0 0.0
    %380 = vmatpush.msra.mxu0 0.0
    %381 = vmatpush.msra.mxu0 0.0
    %382 = vmatpush.msra.mxu0 0.0
    %383 = vmatpush.msra.mxu0 0.0
    %384 = vmatpush.msra.mxu0 0.0
    %v385 = vand.u32 %v331, 4294901760
    %386 = vmatpush.msra.mxu0 %v385
    %v387 = vand.u32 %v330, 4294901760
    %388 = vmatpush.msra.mxu0 %v387
    %v389 = vand.u32 %v329, 4294901760
    %390 = vmatpush.msra.mxu0 %v389
    %v391 = vand.u32 %v328, 4294901760
    %392 = vmatpush.msra.mxu0 %v391
    %v393 = vand.u32 %v362, 4294901760
    %v394 = vsub.f32 %v362, %v393
    %v395 = vand.u32 %v394, 4294901760
    %v396 = vsub.f32 %v394, %v395
    %v397 = vand.u32 %v396, 4294901760
    %398 = vmatmul.f32.gmra.mxu0 %v397
    %v399 = vpop.f32.mrf.mxu0
    %v400 = vadd.f32 %v343, %v399
    %v401 = vand.u32 %v365, 4294901760
    %v402 = vsub.f32 %v365, %v401
    %v403 = vand.u32 %v402, 4294901760
    %v404 = vsub.f32 %v402, %v403
    %v405 = vand.u32 %v404, 4294901760
    %406 = vmatmul.f32.gmra.mxu0 %v405
    %v407 = vpop.f32.mrf.mxu0
    %v408 = vadd.f32 %v348, %v407
    %v409 = vand.u32 %v368, 4294901760
    %v410 = vsub.f32 %v368, %v409
    %v411 = vand.u32 %v410, 4294901760
    %v412 = vsub.f32 %v410, %v411
    %v413 = vand.u32 %v412, 4294901760
    %414 = vmatmul.f32.gmra.mxu0 %v413
    %v415 = vpop.f32.mrf.mxu0
    %v416 = vadd.f32 %v353, %v415
    %v417 = vand.u32 %v371, 4294901760
    %v418 = vsub.f32 %v371, %v417
    %v419 = vand.u32 %v418, 4294901760
    %v420 = vsub.f32 %v418, %v419
    %v421 = vand.u32 %v420, 4294901760
    %422 = vmatmul.f32.gmra.mxu0 %v421
    %v423 = vpop.f32.mrf.mxu0
    %v424 = vadd.f32 %v358, %v423
    %425 = vdwg.mxu0
    %426 = vmatpush.msra.mxu0 0.0
    %427 = vmatpush.msra.mxu0 0.0
    %428 = vmatpush.msra.mxu0 0.0
    %429 = vmatpush.msra.mxu0 0.0
    %430 = vmatpush.msra.mxu0 0.0
    %431 = vmatpush.msra.mxu0 0.0
    %432 = vmatpush.msra.mxu0 0.0
    %433 = vmatpush.msra.mxu0 0.0
    %434 = vmatpush.msra.mxu0 0.0
    %435 = vmatpush.msra.mxu0 0.0
    %436 = vmatpush.msra.mxu0 0.0
    %437 = vmatpush.msra.mxu0 0.0
    %v438 = vand.u32 %v331, 4294901760
    %v439 = vsub.f32 %v331, %v438
    %v440 = vand.u32 %v439, 4294901760
    %v441 = vsub.f32 %v439, %v440
    %v442 = vand.u32 %v441, 4294901760
    %443 = vmatpush.msra.mxu0 %v442
    %v444 = vand.u32 %v330, 4294901760
    %v445 = vsub.f32 %v330, %v444
    %v446 = vand.u32 %v445, 4294901760
    %v447 = vsub.f32 %v445, %v446
    %v448 = vand.u32 %v447, 4294901760
    %449 = vmatpush.msra.mxu0 %v448
    %v450 = vand.u32 %v329, 4294901760
    %v451 = vsub.f32 %v329, %v450
    %v452 = vand.u32 %v451, 4294901760
    %v453 = vsub.f32 %v451, %v452
    %v454 = vand.u32 %v453, 4294901760
    %455 = vmatpush.msra.mxu0 %v454
    %v456 = vand.u32 %v328, 4294901760
    %v457 = vsub.f32 %v328, %v456
    %v458 = vand.u32 %v457, 4294901760
    %v459 = vsub.f32 %v457, %v458
    %v460 = vand.u32 %v459, 4294901760
    %461 = vmatpush.msra.mxu0 %v460
    %v462 = vand.u32 %v362, 4294901760
    %463 = vmatmul.f32.gmra.mxu0 %v462
    %v464 = vpop.f32.mrf.mxu0
    %v465 = vadd.f32 %v400, %v464
    %v466 = vand.u32 %v365, 4294901760
    %467 = vmatmul.f32.gmra.mxu0 %v466
    %v468 = vpop.f32.mrf.mxu0
    %v469 = vadd.f32 %v408, %v468
    %v470 = vand.u32 %v368, 4294901760
    %471 = vmatmul.f32.gmra.mxu0 %v470
    %v472 = vpop.f32.mrf.mxu0
    %v473 = vadd.f32 %v416, %v472
    %v474 = vand.u32 %v371, 4294901760
    %475 = vmatmul.f32.gmra.mxu0 %v474
    %v476 = vpop.f32.mrf.mxu0
    %v477 = vadd.f32 %v424, %v476
    %478 = vdwg.mxu0
    %479 = vmatpush.msra.mxu0 0.0
    %480 = vmatpush.msra.mxu0 0.0
    %481 = vmatpush.msra.mxu0 0.0
    %482 = vmatpush.msra.mxu0 0.0
    %483 = vmatpush.msra.mxu0 0.0
    %484 = vmatpush.msra.mxu0 0.0
    %485 = vmatpush.msra.mxu0 0.0
    %486 = vmatpush.msra.mxu0 0.0
    %487 = vmatpush.msra.mxu0 0.0
    %488 = vmatpush.msra.mxu0 0.0
    %489 = vmatpush.msra.mxu0 0.0
    %490 = vmatpush.msra.mxu0 0.0
    %v491 = vand.u32 %v331, 4294901760
    %v492 = vsub.f32 %v331, %v491
    %493 = vmatpush.msra.mxu0 %v492
    %v494 = vand.u32 %v330, 4294901760
    %v495 = vsub.f32 %v330, %v494
    %496 = vmatpush.msra.mxu0 %v495
    %v497 = vand.u32 %v329, 4294901760
    %v498 = vsub.f32 %v329, %v497
    %499 = vmatpush.msra.mxu0 %v498
    %v500 = vand.u32 %v328, 4294901760
    %v501 = vsub.f32 %v328, %v500
    %502 = vmatpush.msra.mxu0 %v501
    %v503 = vand.u32 %v362, 4294901760
    %v504 = vsub.f32 %v362, %v503
    %505 = vmatmul.f32.gmra.mxu0 %v504
    %v506 = vpop.f32.mrf.mxu0
    %v507 = vadd.f32 %v465, %v506
    %v508 = vand.u32 %v365, 4294901760
    %v509 = vsub.f32 %v365, %v508
    %510 = vmatmul.f32.gmra.mxu0 %v509
    %v511 = vpop.f32.mrf.mxu0
    %v512 = vadd.f32 %v469, %v511
    %v513 = vand.u32 %v368, 4294901760
    %v514 = vsub.f32 %v368, %v513
    %515 = vmatmul.f32.gmra.mxu0 %v514
    %v516 = vpop.f32.mrf.mxu0
    %v517 = vadd.f32 %v473, %v516
    %v518 = vand.u32 %v371, 4294901760
    %v519 = vsub.f32 %v371, %v518
    %520 = vmatmul.f32.gmra.mxu0 %v519
    %v521 = vpop.f32.mrf.mxu0
    %v522 = vadd.f32 %v477, %v521
    %523 = vdwg.mxu0
    %524 = vmatpush.msra.mxu0 0.0
    %525 = vmatpush.msra.mxu0 0.0
    %526 = vmatpush.msra.mxu0 0.0
    %527 = vmatpush.msra.mxu0 0.0
    %528 = vmatpush.msra.mxu0 0.0
    %529 = vmatpush.msra.mxu0 0.0
    %530 = vmatpush.msra.mxu0 0.0
    %531 = vmatpush.msra.mxu0 0.0
    %532 = vmatpush.msra.mxu0 0.0
    %533 = vmatpush.msra.mxu0 0.0
    %534 = vmatpush.msra.mxu0 0.0
    %535 = vmatpush.msra.mxu0 0.0
    %v536 = vand.u32 %v331, 4294901760
    %537 = vmatpush.msra.mxu0 %v536
    %v538 = vand.u32 %v330, 4294901760
    %539 = vmatpush.msra.mxu0 %v538
    %v540 = vand.u32 %v329, 4294901760
    %541 = vmatpush.msra.mxu0 %v540
    %v542 = vand.u32 %v328, 4294901760
    %543 = vmatpush.msra.mxu0 %v542
    %v544 = vand.u32 %v362, 4294901760
    %v545 = vsub.f32 %v362, %v544
    %v546 = vand.u32 %v545, 4294901760
    %547 = vmatmul.f32.gmra.mxu0 %v546
    %v548 = vpop.f32.mrf.mxu0
    %v549 = vadd.f32 %v507, %v548
    %v550 = vand.u32 %v365, 4294901760
    %v551 = vsub.f32 %v365, %v550
    %v552 = vand.u32 %v551, 4294901760
    %553 = vmatmul.f32.gmra.mxu0 %v552
    %v554 = vpop.f32.mrf.mxu0
    %v555 = vadd.f32 %v512, %v554
    %v556 = vand.u32 %v368, 4294901760
    %v557 = vsub.f32 %v368, %v556
    %v558 = vand.u32 %v557, 4294901760
    %559 = vmatmul.f32.gmra.mxu0 %v558
    %v560 = vpop.f32.mrf.mxu0
    %v561 = vadd.f32 %v517, %v560
    %v562 = vand.u32 %v371, 4294901760
    %v563 = vsub.f32 %v371, %v562
    %v564 = vand.u32 %v563, 4294901760
    %565 = vmatmul.f32.gmra.mxu0 %v564
    %v566 = vpop.f32.mrf.mxu0
    %v567 = vadd.f32 %v522, %v566
    %568 = vdwg.mxu0
    %569 = vmatpush.msra.mxu0 0.0
    %570 = vmatpush.msra.mxu0 0.0
    %571 = vmatpush.msra.mxu0 0.0
    %572 = vmatpush.msra.mxu0 0.0
    %573 = vmatpush.msra.mxu0 0.0
    %574 = vmatpush.msra.mxu0 0.0
    %575 = vmatpush.msra.mxu0 0.0
    %576 = vmatpush.msra.mxu0 0.0
    %577 = vmatpush.msra.mxu0 0.0
    %578 = vmatpush.msra.mxu0 0.0
    %579 = vmatpush.msra.mxu0 0.0
    %580 = vmatpush.msra.mxu0 0.0
    %v581 = vand.u32 %v331, 4294901760
    %v582 = vsub.f32 %v331, %v581
    %v583 = vand.u32 %v582, 4294901760
    %584 = vmatpush.msra.mxu0 %v583
    %v585 = vand.u32 %v330, 4294901760
    %v586 = vsub.f32 %v330, %v585
    %v587 = vand.u32 %v586, 4294901760
    %588 = vmatpush.msra.mxu0 %v587
    %v589 = vand.u32 %v329, 4294901760
    %v590 = vsub.f32 %v329, %v589
    %v591 = vand.u32 %v590, 4294901760
    %592 = vmatpush.msra.mxu0 %v591
    %v593 = vand.u32 %v328, 4294901760
    %v594 = vsub.f32 %v328, %v593
    %v595 = vand.u32 %v594, 4294901760
    %596 = vmatpush.msra.mxu0 %v595
    %v597 = vand.u32 %v362, 4294901760
    %598 = vmatmul.f32.gmra.mxu0 %v597
    %v599 = vpop.f32.mrf.mxu0
    %v600 = vadd.f32 %v549, %v599
    %v601 = vand.u32 %v365, 4294901760
    %602 = vmatmul.f32.gmra.mxu0 %v601
    %v603 = vpop.f32.mrf.mxu0
    %v604 = vadd.f32 %v555, %v603
    %v605 = vand.u32 %v368, 4294901760
    %606 = vmatmul.f32.gmra.mxu0 %v605
    %v607 = vpop.f32.mrf.mxu0
    %v608 = vadd.f32 %v561, %v607
    %v609 = vand.u32 %v371, 4294901760
    %610 = vmatmul.f32.gmra.mxu0 %v609
    %v611 = vpop.f32.mrf.mxu0
    %v612 = vadd.f32 %v567, %v611
    %613 = vdwg.mxu0
    %614 = vmatpush.msra.mxu0 0.0
    %615 = vmatpush.msra.mxu0 0.0
    %616 = vmatpush.msra.mxu0 0.0
    %617 = vmatpush.msra.mxu0 0.0
    %618 = vmatpush.msra.mxu0 0.0
    %619 = vmatpush.msra.mxu0 0.0
    %620 = vmatpush.msra.mxu0 0.0
    %621 = vmatpush.msra.mxu0 0.0
    %622 = vmatpush.msra.mxu0 0.0
    %623 = vmatpush.msra.mxu0 0.0
    %624 = vmatpush.msra.mxu0 0.0
    %625 = vmatpush.msra.mxu0 0.0
    %v626 = vand.u32 %v331, 4294901760
    %627 = vmatpush.msra.mxu0 %v626
    %v628 = vand.u32 %v330, 4294901760
    %629 = vmatpush.msra.mxu0 %v628
    %v630 = vand.u32 %v329, 4294901760
    %631 = vmatpush.msra.mxu0 %v630
    %v632 = vand.u32 %v328, 4294901760
    %633 = vmatpush.msra.mxu0 %v632
    %v634 = vand.u32 %v362, 4294901760
    %635 = vmatmul.f32.gmra.mxu0 %v634
    %v636 = vpop.f32.mrf.mxu0
    %v637 = vadd.f32 %v600, %v636
    %v638 = vand.u32 %v365, 4294901760
    %639 = vmatmul.f32.gmra.mxu0 %v638
    %v640 = vpop.f32.mrf.mxu0
    %v641 = vadd.f32 %v604, %v640
    %v642 = vand.u32 %v368, 4294901760
    %643 = vmatmul.f32.gmra.mxu0 %v642
    %v644 = vpop.f32.mrf.mxu0
    %v645 = vadd.f32 %v608, %v644
    %v646 = vand.u32 %v371, 4294901760
    %647 = vmatmul.f32.gmra.mxu0 %v646
    %v648 = vpop.f32.mrf.mxu0
    %v649 = vadd.f32 %v612, %v648
    %650 = vdwg.mxu0
    %v651 = vmax.f32 %v637, 0.0
    %v652 = vmax.f32 %v641, 0.0
    %v653 = vmax.f32 %v645, 0.0
    %v654 = vmax.f32 %v649, 0.0
    %v655 = vld [vmem:[%s3] sm:$0xff]
    %v656 = vld [vmem:[%s3 + $0x8] sm:$0xff]
    %v657 = vld [vmem:[%s3 + $0x10] sm:$0xff]
    %v658 = vld [vmem:[%s3 + $0x18] sm:$0xff]
    %v659 = vld [vmem:[%s7] sm:$0xff]
    %v660 = vld [vmem:[%s7 + $0x8] sm:$0xff]
    %v661 = vld [vmem:[%s7 + $0x10] sm:$0xff]
    %v662 = vld [vmem:[%s7 + $0x18] sm:$0xff]
    %664 = vset.pattern.permute.xlu0 0
    %665 = vperm.xlu0 %664, %v659
    %v666 = vpop.permute.xlu0 %665
    %669 = vset.pattern.permute.xlu0 0
    %670 = vperm.xlu0 %669, %v660
    %v671 = vpop.permute.xlu0 %670
    %674 = vset.pattern.permute.xlu0 0
    %675 = vperm.xlu0 %674, %v661
    %v676 = vpop.permute.xlu0 %675
    %679 = vset.pattern.permute.xlu0 0
    %680 = vperm.xlu0 %679, %v662
    %v681 = vpop.permute.xlu0 %680
    %v684 = vsel %vm360, %v655, 0
    %v687 = vsel %vm360, %v656, 0
    %v690 = vsel %vm360, %v657, 0
    %v693 = vsel %vm360, %v658, 0
    %695 = vmatpush.msra.mxu0 0.0
    %696 = vmatpush.msra.mxu0 0.0
    %697 = vmatpush.msra.mxu0 0.0
    %698 = vmatpush.msra.mxu0 0.0
    %699 = vmatpush.msra.mxu0 0.0
    %700 = vmatpush.msra.mxu0 0.0
    %701 = vmatpush.msra.mxu0 0.0
    %702 = vmatpush.msra.mxu0 0.0
    %703 = vmatpush.msra.mxu0 0.0
    %704 = vmatpush.msra.mxu0 0.0
    %705 = vmatpush.msra.mxu0 0.0
    %706 = vmatpush.msra.mxu0 0.0
    %v707 = vand.u32 %v654, 4294901760
    %708 = vmatpush.msra.mxu0 %v707
    %v709 = vand.u32 %v653, 4294901760
    %710 = vmatpush.msra.mxu0 %v709
    %v711 = vand.u32 %v652, 4294901760
    %712 = vmatpush.msra.mxu0 %v711
    %v713 = vand.u32 %v651, 4294901760
    %714 = vmatpush.msra.mxu0 %v713
    %v715 = vand.u32 %v684, 4294901760
    %v716 = vsub.f32 %v684, %v715
    %v717 = vand.u32 %v716, 4294901760
    %v718 = vsub.f32 %v716, %v717
    %v719 = vand.u32 %v718, 4294901760
    %720 = vmatmul.f32.gmra.mxu0 %v719
    %v721 = vpop.f32.mrf.mxu0
    %v722 = vadd.f32 %v666, %v721
    %v723 = vand.u32 %v687, 4294901760
    %v724 = vsub.f32 %v687, %v723
    %v725 = vand.u32 %v724, 4294901760
    %v726 = vsub.f32 %v724, %v725
    %v727 = vand.u32 %v726, 4294901760
    %728 = vmatmul.f32.gmra.mxu0 %v727
    %v729 = vpop.f32.mrf.mxu0
    %v730 = vadd.f32 %v671, %v729
    %v731 = vand.u32 %v690, 4294901760
    %v732 = vsub.f32 %v690, %v731
    %v733 = vand.u32 %v732, 4294901760
    %v734 = vsub.f32 %v732, %v733
    %v735 = vand.u32 %v734, 4294901760
    %736 = vmatmul.f32.gmra.mxu0 %v735
    %v737 = vpop.f32.mrf.mxu0
    %v738 = vadd.f32 %v676, %v737
    %v739 = vand.u32 %v693, 4294901760
    %v740 = vsub.f32 %v693, %v739
    %v741 = vand.u32 %v740, 4294901760
    %v742 = vsub.f32 %v740, %v741
    %v743 = vand.u32 %v742, 4294901760
    %744 = vmatmul.f32.gmra.mxu0 %v743
    %v745 = vpop.f32.mrf.mxu0
    %v746 = vadd.f32 %v681, %v745
    %747 = vdwg.mxu0
    %748 = vmatpush.msra.mxu0 0.0
    %749 = vmatpush.msra.mxu0 0.0
    %750 = vmatpush.msra.mxu0 0.0
    %751 = vmatpush.msra.mxu0 0.0
    %752 = vmatpush.msra.mxu0 0.0
    %753 = vmatpush.msra.mxu0 0.0
    %754 = vmatpush.msra.mxu0 0.0
    %755 = vmatpush.msra.mxu0 0.0
    %756 = vmatpush.msra.mxu0 0.0
    %757 = vmatpush.msra.mxu0 0.0
    %758 = vmatpush.msra.mxu0 0.0
    %759 = vmatpush.msra.mxu0 0.0
    %v760 = vand.u32 %v654, 4294901760
    %v761 = vsub.f32 %v654, %v760
    %v762 = vand.u32 %v761, 4294901760
    %v763 = vsub.f32 %v761, %v762
    %v764 = vand.u32 %v763, 4294901760
    %765 = vmatpush.msra.mxu0 %v764
    %v766 = vand.u32 %v653, 4294901760
    %v767 = vsub.f32 %v653, %v766
    %v768 = vand.u32 %v767, 4294901760
    %v769 = vsub.f32 %v767, %v768
    %v770 = vand.u32 %v769, 4294901760
    %771 = vmatpush.msra.mxu0 %v770
    %v772 = vand.u32 %v652, 4294901760
    %v773 = vsub.f32 %v652, %v772
    %v774 = vand.u32 %v773, 4294901760
    %v775 = vsub.f32 %v773, %v774
    %v776 = vand.u32 %v775, 4294901760
    %777 = vmatpush.msra.mxu0 %v776
    %v778 = vand.u32 %v651, 4294901760
    %v779 = vsub.f32 %v651, %v778
    %v780 = vand.u32 %v779, 4294901760
    %v781 = vsub.f32 %v779, %v780
    %v782 = vand.u32 %v781, 4294901760
    %783 = vmatpush.msra.mxu0 %v782
    %v784 = vand.u32 %v684, 4294901760
    %785 = vmatmul.f32.gmra.mxu0 %v784
    %v786 = vpop.f32.mrf.mxu0
    %v787 = vadd.f32 %v722, %v786
    %v788 = vand.u32 %v687, 4294901760
    %789 = vmatmul.f32.gmra.mxu0 %v788
    %v790 = vpop.f32.mrf.mxu0
    %v791 = vadd.f32 %v730, %v790
    %v792 = vand.u32 %v690, 4294901760
    %793 = vmatmul.f32.gmra.mxu0 %v792
    %v794 = vpop.f32.mrf.mxu0
    %v795 = vadd.f32 %v738, %v794
    %v796 = vand.u32 %v693, 4294901760
    %797 = vmatmul.f32.gmra.mxu0 %v796
    %v798 = vpop.f32.mrf.mxu0
    %v799 = vadd.f32 %v746, %v798
    %800 = vdwg.mxu0
    %801 = vmatpush.msra.mxu0 0.0
    %802 = vmatpush.msra.mxu0 0.0
    %803 = vmatpush.msra.mxu0 0.0
    %804 = vmatpush.msra.mxu0 0.0
    %805 = vmatpush.msra.mxu0 0.0
    %806 = vmatpush.msra.mxu0 0.0
    %807 = vmatpush.msra.mxu0 0.0
    %808 = vmatpush.msra.mxu0 0.0
    %809 = vmatpush.msra.mxu0 0.0
    %810 = vmatpush.msra.mxu0 0.0
    %811 = vmatpush.msra.mxu0 0.0
    %812 = vmatpush.msra.mxu0 0.0
    %v813 = vand.u32 %v654, 4294901760
    %v814 = vsub.f32 %v654, %v813
    %815 = vmatpush.msra.mxu0 %v814
    %v816 = vand.u32 %v653, 4294901760
    %v817 = vsub.f32 %v653, %v816
    %818 = vmatpush.msra.mxu0 %v817
    %v819 = vand.u32 %v652, 4294901760
    %v820 = vsub.f32 %v652, %v819
    %821 = vmatpush.msra.mxu0 %v820
    %v822 = vand.u32 %v651, 4294901760
    %v823 = vsub.f32 %v651, %v822
    %824 = vmatpush.msra.mxu0 %v823
    %v825 = vand.u32 %v684, 4294901760
    %v826 = vsub.f32 %v684, %v825
    %827 = vmatmul.f32.gmra.mxu0 %v826
    %v828 = vpop.f32.mrf.mxu0
    %v829 = vadd.f32 %v787, %v828
    %v830 = vand.u32 %v687, 4294901760
    %v831 = vsub.f32 %v687, %v830
    %832 = vmatmul.f32.gmra.mxu0 %v831
    %v833 = vpop.f32.mrf.mxu0
    %v834 = vadd.f32 %v791, %v833
    %v835 = vand.u32 %v690, 4294901760
    %v836 = vsub.f32 %v690, %v835
    %837 = vmatmul.f32.gmra.mxu0 %v836
    %v838 = vpop.f32.mrf.mxu0
    %v839 = vadd.f32 %v795, %v838
    %v840 = vand.u32 %v693, 4294901760
    %v841 = vsub.f32 %v693, %v840
    %842 = vmatmul.f32.gmra.mxu0 %v841
    %v843 = vpop.f32.mrf.mxu0
    %v844 = vadd.f32 %v799, %v843
    %845 = vdwg.mxu0
    %846 = vmatpush.msra.mxu0 0.0
    %847 = vmatpush.msra.mxu0 0.0
    %848 = vmatpush.msra.mxu0 0.0
    %849 = vmatpush.msra.mxu0 0.0
    %850 = vmatpush.msra.mxu0 0.0
    %851 = vmatpush.msra.mxu0 0.0
    %852 = vmatpush.msra.mxu0 0.0
    %853 = vmatpush.msra.mxu0 0.0
    %854 = vmatpush.msra.mxu0 0.0
    %855 = vmatpush.msra.mxu0 0.0
    %856 = vmatpush.msra.mxu0 0.0
    %857 = vmatpush.msra.mxu0 0.0
    %v858 = vand.u32 %v654, 4294901760
    %859 = vmatpush.msra.mxu0 %v858
    %v860 = vand.u32 %v653, 4294901760
    %861 = vmatpush.msra.mxu0 %v860
    %v862 = vand.u32 %v652, 4294901760
    %863 = vmatpush.msra.mxu0 %v862
    %v864 = vand.u32 %v651, 4294901760
    %865 = vmatpush.msra.mxu0 %v864
    %v866 = vand.u32 %v684, 4294901760
    %v867 = vsub.f32 %v684, %v866
    %v868 = vand.u32 %v867, 4294901760
    %869 = vmatmul.f32.gmra.mxu0 %v868
    %v870 = vpop.f32.mrf.mxu0
    %v871 = vadd.f32 %v829, %v870
    %v872 = vand.u32 %v687, 4294901760
    %v873 = vsub.f32 %v687, %v872
    %v874 = vand.u32 %v873, 4294901760
    %875 = vmatmul.f32.gmra.mxu0 %v874
    %v876 = vpop.f32.mrf.mxu0
    %v877 = vadd.f32 %v834, %v876
    %v878 = vand.u32 %v690, 4294901760
    %v879 = vsub.f32 %v690, %v878
    %v880 = vand.u32 %v879, 4294901760
    %881 = vmatmul.f32.gmra.mxu0 %v880
    %v882 = vpop.f32.mrf.mxu0
    %v883 = vadd.f32 %v839, %v882
    %v884 = vand.u32 %v693, 4294901760
    %v885 = vsub.f32 %v693, %v884
    %v886 = vand.u32 %v885, 4294901760
    %887 = vmatmul.f32.gmra.mxu0 %v886
    %v888 = vpop.f32.mrf.mxu0
    %v889 = vadd.f32 %v844, %v888
    %890 = vdwg.mxu0
    %891 = vmatpush.msra.mxu0 0.0
    %892 = vmatpush.msra.mxu0 0.0
    %893 = vmatpush.msra.mxu0 0.0
    %894 = vmatpush.msra.mxu0 0.0
    %895 = vmatpush.msra.mxu0 0.0
    %896 = vmatpush.msra.mxu0 0.0
    %897 = vmatpush.msra.mxu0 0.0
    %898 = vmatpush.msra.mxu0 0.0
    %899 = vmatpush.msra.mxu0 0.0
    %900 = vmatpush.msra.mxu0 0.0
    %901 = vmatpush.msra.mxu0 0.0
    %902 = vmatpush.msra.mxu0 0.0
    %v903 = vand.u32 %v654, 4294901760
    %v904 = vsub.f32 %v654, %v903
    %v905 = vand.u32 %v904, 4294901760
    %906 = vmatpush.msra.mxu0 %v905
    %v907 = vand.u32 %v653, 4294901760
    %v908 = vsub.f32 %v653, %v907
    %v909 = vand.u32 %v908, 4294901760
    %910 = vmatpush.msra.mxu0 %v909
    %v911 = vand.u32 %v652, 4294901760
    %v912 = vsub.f32 %v652, %v911
    %v913 = vand.u32 %v912, 4294901760
    %914 = vmatpush.msra.mxu0 %v913
    %v915 = vand.u32 %v651, 4294901760
    %v916 = vsub.f32 %v651, %v915
    %v917 = vand.u32 %v916, 4294901760
    %918 = vmatpush.msra.mxu0 %v917
    %v919 = vand.u32 %v684, 4294901760
    %920 = vmatmul.f32.gmra.mxu0 %v919
    %v921 = vpop.f32.mrf.mxu0
    %v922 = vadd.f32 %v871, %v921
    %v923 = vand.u32 %v687, 4294901760
    %924 = vmatmul.f32.gmra.mxu0 %v923
    %v925 = vpop.f32.mrf.mxu0
    %v926 = vadd.f32 %v877, %v925
    %v927 = vand.u32 %v690, 4294901760
    %928 = vmatmul.f32.gmra.mxu0 %v927
    %v929 = vpop.f32.mrf.mxu0
    %v930 = vadd.f32 %v883, %v929
    %v931 = vand.u32 %v693, 4294901760
    %932 = vmatmul.f32.gmra.mxu0 %v931
    %v933 = vpop.f32.mrf.mxu0
    %v934 = vadd.f32 %v889, %v933
    %935 = vdwg.mxu0
    %936 = vmatpush.msra.mxu0 0.0
    %937 = vmatpush.msra.mxu0 0.0
    %938 = vmatpush.msra.mxu0 0.0
    %939 = vmatpush.msra.mxu0 0.0
    %940 = vmatpush.msra.mxu0 0.0
    %941 = vmatpush.msra.mxu0 0.0
    %942 = vmatpush.msra.mxu0 0.0
    %943 = vmatpush.msra.mxu0 0.0
    %944 = vmatpush.msra.mxu0 0.0
    %945 = vmatpush.msra.mxu0 0.0
    %946 = vmatpush.msra.mxu0 0.0
    %947 = vmatpush.msra.mxu0 0.0
    %v948 = vand.u32 %v654, 4294901760
    %949 = vmatpush.msra.mxu0 %v948
    %v950 = vand.u32 %v653, 4294901760
    %951 = vmatpush.msra.mxu0 %v950
    %v952 = vand.u32 %v652, 4294901760
    %953 = vmatpush.msra.mxu0 %v952
    %v954 = vand.u32 %v651, 4294901760
    %955 = vmatpush.msra.mxu0 %v954
    %v956 = vand.u32 %v684, 4294901760
    %957 = vmatmul.f32.gmra.mxu0 %v956
    %v958 = vpop.f32.mrf.mxu0
    %v959 = vadd.f32 %v922, %v958
    %v960 = vand.u32 %v687, 4294901760
    %961 = vmatmul.f32.gmra.mxu0 %v960
    %v962 = vpop.f32.mrf.mxu0
    %v963 = vadd.f32 %v926, %v962
    %v964 = vand.u32 %v690, 4294901760
    %965 = vmatmul.f32.gmra.mxu0 %v964
    %v966 = vpop.f32.mrf.mxu0
    %v967 = vadd.f32 %v930, %v966
    %v968 = vand.u32 %v693, 4294901760
    %969 = vmatmul.f32.gmra.mxu0 %v968
    %v970 = vpop.f32.mrf.mxu0
    %v971 = vadd.f32 %v934, %v970
    %972 = vdwg.mxu0
    %v973 = vmax.f32 %v959, 0.0
    %v974 = vmax.f32 %v963, 0.0
    %v975 = vmax.f32 %v967, 0.0
    %v976 = vmax.f32 %v971, 0.0
    %v977 = vld [vmem:[%s4] sm:$0xff]
    %v978 = vld [vmem:[%s4 + $0x8] sm:$0xff]
    %v979 = vld [vmem:[%s4 + $0x10] sm:$0xff]
    %v980 = vld [vmem:[%s4 + $0x18] sm:$0xff]
    %v981 = vld [vmem:[%s8] sm:$0xff]
    %v982 = vld [vmem:[%s8 + $0x8] sm:$0xff]
    %v983 = vld [vmem:[%s8 + $0x10] sm:$0xff]
    %v984 = vld [vmem:[%s8 + $0x18] sm:$0xff]
    %986 = vset.pattern.permute.xlu0 0
    %987 = vperm.xlu0 %986, %v981
    %v988 = vpop.permute.xlu0 %987
    %991 = vset.pattern.permute.xlu0 0
    %992 = vperm.xlu0 %991, %v982
    %v993 = vpop.permute.xlu0 %992
    %996 = vset.pattern.permute.xlu0 0
    %997 = vperm.xlu0 %996, %v983
    %v998 = vpop.permute.xlu0 %997
    %1001 = vset.pattern.permute.xlu0 0
    %1002 = vperm.xlu0 %1001, %v984
    %v1003 = vpop.permute.xlu0 %1002
    %v1006 = vsel %vm360, %v977, 0
    %v1009 = vsel %vm360, %v978, 0
    %v1012 = vsel %vm360, %v979, 0
    %v1015 = vsel %vm360, %v980, 0
    %1017 = vmatpush.msra.mxu0 0.0
    %1018 = vmatpush.msra.mxu0 0.0
    %1019 = vmatpush.msra.mxu0 0.0
    %1020 = vmatpush.msra.mxu0 0.0
    %1021 = vmatpush.msra.mxu0 0.0
    %1022 = vmatpush.msra.mxu0 0.0
    %1023 = vmatpush.msra.mxu0 0.0
    %1024 = vmatpush.msra.mxu0 0.0
    %1025 = vmatpush.msra.mxu0 0.0
    %1026 = vmatpush.msra.mxu0 0.0
    %1027 = vmatpush.msra.mxu0 0.0
    %1028 = vmatpush.msra.mxu0 0.0
    %v1029 = vand.u32 %v976, 4294901760
    %1030 = vmatpush.msra.mxu0 %v1029
    %v1031 = vand.u32 %v975, 4294901760
    %1032 = vmatpush.msra.mxu0 %v1031
    %v1033 = vand.u32 %v974, 4294901760
    %1034 = vmatpush.msra.mxu0 %v1033
    %v1035 = vand.u32 %v973, 4294901760
    %1036 = vmatpush.msra.mxu0 %v1035
    %v1037 = vand.u32 %v1006, 4294901760
    %v1038 = vsub.f32 %v1006, %v1037
    %v1039 = vand.u32 %v1038, 4294901760
    %v1040 = vsub.f32 %v1038, %v1039
    %v1041 = vand.u32 %v1040, 4294901760
    %1042 = vmatmul.f32.gmra.mxu0 %v1041
    %v1043 = vpop.f32.mrf.mxu0
    %v1044 = vadd.f32 %v988, %v1043
    %v1045 = vand.u32 %v1009, 4294901760
    %v1046 = vsub.f32 %v1009, %v1045
    %v1047 = vand.u32 %v1046, 4294901760
    %v1048 = vsub.f32 %v1046, %v1047
    %v1049 = vand.u32 %v1048, 4294901760
    %1050 = vmatmul.f32.gmra.mxu0 %v1049
    %v1051 = vpop.f32.mrf.mxu0
    %v1052 = vadd.f32 %v993, %v1051
    %v1053 = vand.u32 %v1012, 4294901760
    %v1054 = vsub.f32 %v1012, %v1053
    %v1055 = vand.u32 %v1054, 4294901760
    %v1056 = vsub.f32 %v1054, %v1055
    %v1057 = vand.u32 %v1056, 4294901760
    %1058 = vmatmul.f32.gmra.mxu0 %v1057
    %v1059 = vpop.f32.mrf.mxu0
    %v1060 = vadd.f32 %v998, %v1059
    %v1061 = vand.u32 %v1015, 4294901760
    %v1062 = vsub.f32 %v1015, %v1061
    %v1063 = vand.u32 %v1062, 4294901760
    %v1064 = vsub.f32 %v1062, %v1063
    %v1065 = vand.u32 %v1064, 4294901760
    %1066 = vmatmul.f32.gmra.mxu0 %v1065
    %v1067 = vpop.f32.mrf.mxu0
    %v1068 = vadd.f32 %v1003, %v1067
    %1069 = vdwg.mxu0
    %1070 = vmatpush.msra.mxu0 0.0
    %1071 = vmatpush.msra.mxu0 0.0
    %1072 = vmatpush.msra.mxu0 0.0
    %1073 = vmatpush.msra.mxu0 0.0
    %1074 = vmatpush.msra.mxu0 0.0
    %1075 = vmatpush.msra.mxu0 0.0
    %1076 = vmatpush.msra.mxu0 0.0
    %1077 = vmatpush.msra.mxu0 0.0
    %1078 = vmatpush.msra.mxu0 0.0
    %1079 = vmatpush.msra.mxu0 0.0
    %1080 = vmatpush.msra.mxu0 0.0
    %1081 = vmatpush.msra.mxu0 0.0
    %v1082 = vand.u32 %v976, 4294901760
    %v1083 = vsub.f32 %v976, %v1082
    %v1084 = vand.u32 %v1083, 4294901760
    %v1085 = vsub.f32 %v1083, %v1084
    %v1086 = vand.u32 %v1085, 4294901760
    %1087 = vmatpush.msra.mxu0 %v1086
    %v1088 = vand.u32 %v975, 4294901760
    %v1089 = vsub.f32 %v975, %v1088
    %v1090 = vand.u32 %v1089, 4294901760
    %v1091 = vsub.f32 %v1089, %v1090
    %v1092 = vand.u32 %v1091, 4294901760
    %1093 = vmatpush.msra.mxu0 %v1092
    %v1094 = vand.u32 %v974, 4294901760
    %v1095 = vsub.f32 %v974, %v1094
    %v1096 = vand.u32 %v1095, 4294901760
    %v1097 = vsub.f32 %v1095, %v1096
    %v1098 = vand.u32 %v1097, 4294901760
    %1099 = vmatpush.msra.mxu0 %v1098
    %v1100 = vand.u32 %v973, 4294901760
    %v1101 = vsub.f32 %v973, %v1100
    %v1102 = vand.u32 %v1101, 4294901760
    %v1103 = vsub.f32 %v1101, %v1102
    %v1104 = vand.u32 %v1103, 4294901760
    %1105 = vmatpush.msra.mxu0 %v1104
    %v1106 = vand.u32 %v1006, 4294901760
    %1107 = vmatmul.f32.gmra.mxu0 %v1106
    %v1108 = vpop.f32.mrf.mxu0
    %v1109 = vadd.f32 %v1044, %v1108
    %v1110 = vand.u32 %v1009, 4294901760
    %1111 = vmatmul.f32.gmra.mxu0 %v1110
    %v1112 = vpop.f32.mrf.mxu0
    %v1113 = vadd.f32 %v1052, %v1112
    %v1114 = vand.u32 %v1012, 4294901760
    %1115 = vmatmul.f32.gmra.mxu0 %v1114
    %v1116 = vpop.f32.mrf.mxu0
    %v1117 = vadd.f32 %v1060, %v1116
    %v1118 = vand.u32 %v1015, 4294901760
    %1119 = vmatmul.f32.gmra.mxu0 %v1118
    %v1120 = vpop.f32.mrf.mxu0
    %v1121 = vadd.f32 %v1068, %v1120
    %1122 = vdwg.mxu0
    %1123 = vmatpush.msra.mxu0 0.0
    %1124 = vmatpush.msra.mxu0 0.0
    %1125 = vmatpush.msra.mxu0 0.0
    %1126 = vmatpush.msra.mxu0 0.0
    %1127 = vmatpush.msra.mxu0 0.0
    %1128 = vmatpush.msra.mxu0 0.0
    %1129 = vmatpush.msra.mxu0 0.0
    %1130 = vmatpush.msra.mxu0 0.0
    %1131 = vmatpush.msra.mxu0 0.0
    %1132 = vmatpush.msra.mxu0 0.0
    %1133 = vmatpush.msra.mxu0 0.0
    %1134 = vmatpush.msra.mxu0 0.0
    %v1135 = vand.u32 %v976, 4294901760
    %v1136 = vsub.f32 %v976, %v1135
    %1137 = vmatpush.msra.mxu0 %v1136
    %v1138 = vand.u32 %v975, 4294901760
    %v1139 = vsub.f32 %v975, %v1138
    %1140 = vmatpush.msra.mxu0 %v1139
    %v1141 = vand.u32 %v974, 4294901760
    %v1142 = vsub.f32 %v974, %v1141
    %1143 = vmatpush.msra.mxu0 %v1142
    %v1144 = vand.u32 %v973, 4294901760
    %v1145 = vsub.f32 %v973, %v1144
    %1146 = vmatpush.msra.mxu0 %v1145
    %v1147 = vand.u32 %v1006, 4294901760
    %v1148 = vsub.f32 %v1006, %v1147
    %1149 = vmatmul.f32.gmra.mxu0 %v1148
    %v1150 = vpop.f32.mrf.mxu0
    %v1151 = vadd.f32 %v1109, %v1150
    %v1152 = vand.u32 %v1009, 4294901760
    %v1153 = vsub.f32 %v1009, %v1152
    %1154 = vmatmul.f32.gmra.mxu0 %v1153
    %v1155 = vpop.f32.mrf.mxu0
    %v1156 = vadd.f32 %v1113, %v1155
    %v1157 = vand.u32 %v1012, 4294901760
    %v1158 = vsub.f32 %v1012, %v1157
    %1159 = vmatmul.f32.gmra.mxu0 %v1158
    %v1160 = vpop.f32.mrf.mxu0
    %v1161 = vadd.f32 %v1117, %v1160
    %v1162 = vand.u32 %v1015, 4294901760
    %v1163 = vsub.f32 %v1015, %v1162
    %1164 = vmatmul.f32.gmra.mxu0 %v1163
    %v1165 = vpop.f32.mrf.mxu0
    %v1166 = vadd.f32 %v1121, %v1165
    %1167 = vdwg.mxu0
    %1168 = vmatpush.msra.mxu0 0.0
    %1169 = vmatpush.msra.mxu0 0.0
    %1170 = vmatpush.msra.mxu0 0.0
    %1171 = vmatpush.msra.mxu0 0.0
    %1172 = vmatpush.msra.mxu0 0.0
    %1173 = vmatpush.msra.mxu0 0.0
    %1174 = vmatpush.msra.mxu0 0.0
    %1175 = vmatpush.msra.mxu0 0.0
    %1176 = vmatpush.msra.mxu0 0.0
    %1177 = vmatpush.msra.mxu0 0.0
    %1178 = vmatpush.msra.mxu0 0.0
    %1179 = vmatpush.msra.mxu0 0.0
    %v1180 = vand.u32 %v976, 4294901760
    %1181 = vmatpush.msra.mxu0 %v1180
    %v1182 = vand.u32 %v975, 4294901760
    %1183 = vmatpush.msra.mxu0 %v1182
    %v1184 = vand.u32 %v974, 4294901760
    %1185 = vmatpush.msra.mxu0 %v1184
    %v1186 = vand.u32 %v973, 4294901760
    %1187 = vmatpush.msra.mxu0 %v1186
    %v1188 = vand.u32 %v1006, 4294901760
    %v1189 = vsub.f32 %v1006, %v1188
    %v1190 = vand.u32 %v1189, 4294901760
    %1191 = vmatmul.f32.gmra.mxu0 %v1190
    %v1192 = vpop.f32.mrf.mxu0
    %v1193 = vadd.f32 %v1151, %v1192
    %v1194 = vand.u32 %v1009, 4294901760
    %v1195 = vsub.f32 %v1009, %v1194
    %v1196 = vand.u32 %v1195, 4294901760
    %1197 = vmatmul.f32.gmra.mxu0 %v1196
    %v1198 = vpop.f32.mrf.mxu0
    %v1199 = vadd.f32 %v1156, %v1198
    %v1200 = vand.u32 %v1012, 4294901760
    %v1201 = vsub.f32 %v1012, %v1200
    %v1202 = vand.u32 %v1201, 4294901760
    %1203 = vmatmul.f32.gmra.mxu0 %v1202
    %v1204 = vpop.f32.mrf.mxu0
    %v1205 = vadd.f32 %v1161, %v1204
    %v1206 = vand.u32 %v1015, 4294901760
    %v1207 = vsub.f32 %v1015, %v1206
    %v1208 = vand.u32 %v1207, 4294901760
    %1209 = vmatmul.f32.gmra.mxu0 %v1208
    %v1210 = vpop.f32.mrf.mxu0
    %v1211 = vadd.f32 %v1166, %v1210
    %1212 = vdwg.mxu0
    %1213 = vmatpush.msra.mxu0 0.0
    %1214 = vmatpush.msra.mxu0 0.0
    %1215 = vmatpush.msra.mxu0 0.0
    %1216 = vmatpush.msra.mxu0 0.0
    %1217 = vmatpush.msra.mxu0 0.0
    %1218 = vmatpush.msra.mxu0 0.0
    %1219 = vmatpush.msra.mxu0 0.0
    %1220 = vmatpush.msra.mxu0 0.0
    %1221 = vmatpush.msra.mxu0 0.0
    %1222 = vmatpush.msra.mxu0 0.0
    %1223 = vmatpush.msra.mxu0 0.0
    %1224 = vmatpush.msra.mxu0 0.0
    %v1225 = vand.u32 %v976, 4294901760
    %v1226 = vsub.f32 %v976, %v1225
    %v1227 = vand.u32 %v1226, 4294901760
    %1228 = vmatpush.msra.mxu0 %v1227
    %v1229 = vand.u32 %v975, 4294901760
    %v1230 = vsub.f32 %v975, %v1229
    %v1231 = vand.u32 %v1230, 4294901760
    %1232 = vmatpush.msra.mxu0 %v1231
    %v1233 = vand.u32 %v974, 4294901760
    %v1234 = vsub.f32 %v974, %v1233
    %v1235 = vand.u32 %v1234, 4294901760
    %1236 = vmatpush.msra.mxu0 %v1235
    %v1237 = vand.u32 %v973, 4294901760
    %v1238 = vsub.f32 %v973, %v1237
    %v1239 = vand.u32 %v1238, 4294901760
    %1240 = vmatpush.msra.mxu0 %v1239
    %v1241 = vand.u32 %v1006, 4294901760
    %1242 = vmatmul.f32.gmra.mxu0 %v1241
    %v1243 = vpop.f32.mrf.mxu0
    %v1244 = vadd.f32 %v1193, %v1243
    %v1245 = vand.u32 %v1009, 4294901760
    %1246 = vmatmul.f32.gmra.mxu0 %v1245
    %v1247 = vpop.f32.mrf.mxu0
    %v1248 = vadd.f32 %v1199, %v1247
    %v1249 = vand.u32 %v1012, 4294901760
    %1250 = vmatmul.f32.gmra.mxu0 %v1249
    %v1251 = vpop.f32.mrf.mxu0
    %v1252 = vadd.f32 %v1205, %v1251
    %v1253 = vand.u32 %v1015, 4294901760
    %1254 = vmatmul.f32.gmra.mxu0 %v1253
    %v1255 = vpop.f32.mrf.mxu0
    %v1256 = vadd.f32 %v1211, %v1255
    %1257 = vdwg.mxu0
    %1258 = vmatpush.msra.mxu0 0.0
    %1259 = vmatpush.msra.mxu0 0.0
    %1260 = vmatpush.msra.mxu0 0.0
    %1261 = vmatpush.msra.mxu0 0.0
    %1262 = vmatpush.msra.mxu0 0.0
    %1263 = vmatpush.msra.mxu0 0.0
    %1264 = vmatpush.msra.mxu0 0.0
    %1265 = vmatpush.msra.mxu0 0.0
    %1266 = vmatpush.msra.mxu0 0.0
    %1267 = vmatpush.msra.mxu0 0.0
    %1268 = vmatpush.msra.mxu0 0.0
    %1269 = vmatpush.msra.mxu0 0.0
    %v1270 = vand.u32 %v976, 4294901760
    %1271 = vmatpush.msra.mxu0 %v1270
    %v1272 = vand.u32 %v975, 4294901760
    %1273 = vmatpush.msra.mxu0 %v1272
    %v1274 = vand.u32 %v974, 4294901760
    %1275 = vmatpush.msra.mxu0 %v1274
    %v1276 = vand.u32 %v973, 4294901760
    %1277 = vmatpush.msra.mxu0 %v1276
    %v1278 = vand.u32 %v1006, 4294901760
    %1279 = vmatmul.f32.gmra.mxu0 %v1278
    %v1280 = vpop.f32.mrf.mxu0
    %v1281 = vadd.f32 %v1244, %v1280
    %v1282 = vand.u32 %v1009, 4294901760
    %1283 = vmatmul.f32.gmra.mxu0 %v1282
    %v1284 = vpop.f32.mrf.mxu0
    %v1285 = vadd.f32 %v1248, %v1284
    %v1286 = vand.u32 %v1012, 4294901760
    %1287 = vmatmul.f32.gmra.mxu0 %v1286
    %v1288 = vpop.f32.mrf.mxu0
    %v1289 = vadd.f32 %v1252, %v1288
    %v1290 = vand.u32 %v1015, 4294901760
    %1291 = vmatmul.f32.gmra.mxu0 %v1290
    %v1292 = vpop.f32.mrf.mxu0
    %v1293 = vadd.f32 %v1256, %v1292
    %1294 = vdwg.mxu0
    %v1295 = vmax.f32 %v1281, 0.0
    %v1296 = vmax.f32 %v1285, 0.0
    %v1297 = vmax.f32 %v1289, 0.0
    %v1298 = vmax.f32 %v1293, 0.0
    %1299 = vst [vmem:[#allocation2] sm:$0xff] %v1295
    %1300 = vst [vmem:[#allocation2 + $0x8] sm:$0xff] %v1296
    %1301 = vst [vmem:[#allocation2 + $0x10] sm:$0xff] %v1297
    %1302 = vst [vmem:[#allocation2 + $0x18] sm:$0xff] %v1298
    // Predicated region
    $region38: #{tpu_custom_call.1} parent=1 // pred_check
      _
    $region39: #{tpu_custom_call.1} parent=1 // pred_check_branch
      %1304 = sbr.rel (0) target = $region41
    $region40: #{tpu_custom_call.1} parent=1 // pred_region
      %1306 = vsyncadd [#allocation3], 0
      %s1307 = sshll.u32 [#allocation2], 4
      %s1308 = int_to_ptr.vmem [resolvable:$true] %s1307
      %s1309 = sshll.u32 %s9, 4
      %s1310 = int_to_ptr.hbm [resolvable:$true] %s1309
      %1315 = dma.vmem_to_hbm [thread:$0]  %s1308, 512, %s1310, [#allocation3], 128, 128, 8
    $region41: #{tpu_custom_call.1} parent=1 // pred_fallthru
      _
    // Predicated region
    $region42: #{tpu_custom_call.1} parent=1 // pred_check
      _
    $region43: #{tpu_custom_call.1} parent=1 // pred_check_branch
      %1317 = sbr.rel (0) target = $region45
    $region44: #{tpu_custom_call.1} parent=1 // pred_region
      %1319 = dma.done [#allocation3], 512
    $region45: #{tpu_custom_call.1} parent=1 // pred_fallthru
      _
    %1320 = vsyncpa [#allocation3], 1

</llo_original>
